<compile_context>
chip_gen: v7x
topology: tpu7x:2x2x1
jax: 0.10.0
libtpu: 0.0.40
codegen_flags: <defaults>
</compile_context>

<pallas_src>
import jax
import jax.numpy as jnp
from jax.experimental import pallas as pl
from jax.experimental.pallas import tpu as pltpu

_LANE = 128
_SUBLANE = 8


def _round_up(n, m):
    return ((n + m - 1) // m) * m


def _vmem_budget_bytes():
    # Physical VMEM: 128 MiB/TC on v5e/v6e, 64 MiB/TC on v7x.  Keep ~25% headroom
    # for compiler scratch; fall back to the v7x floor if the query is unavailable.
    try:
        cap = int(pltpu.get_tpu_info().vmem_capacity_bytes)
    except Exception:
        cap = 64 * 1024 * 1024
    return (cap * 3) // 4


def _pick_batch_tile(B, C, itemsize, vmem_budget):
    # Per batch-row VMEM cost of the pipelined activation buffers:
    # (input + output) x double-buffered x lane-padded C x itemsize.
    c_pad = _round_up(max(C, 1), _LANE)
    bytes_per_row = 2 * 2 * c_pad * itemsize
    tb = (vmem_budget // bytes_per_row) // _SUBLANE * _SUBLANE
    tb = min(tb, 128 * 1024)                       # diminishing returns past this
    # Keep >= 2 grid steps when there is real work so both v7x TensorCores get a
    # share under dimension_semantics=("parallel",).
    if B > 8192:
        tb = min(tb, _round_up(pl.cdiv(B, 2), 512))
    # Tiny problems: a single, sublane-aligned tile (one grid step).
    tb = min(tb, _round_up(B, _SUBLANE))
    return max(tb, _SUBLANE)


def _coae_mlp_kernel(x_ref, w1_ref, b1_ref, w2_ref, b2_ref, o_ref):
    # x_ref: (tb, C) in the model's native batch-major layout.
    x = x_ref[...]
    # (tb, C) @ (C, H) -> (tb, H): f32 MXU accumulation; bias + ReLU on the f32
    # accumulator (keeps the epilogue legal on v5e's f32-only VPU).
    h = jnp.dot(x, w1_ref[...], preferred_element_type=jnp.float32) + b1_ref[...]
    h = jnp.maximum(h, 0.0)
    # (tb, H) @ (H, C) -> (tb, C), bias add in the epilogue.
    y = jnp.dot(h.astype(w2_ref.dtype), w2_ref[...],
                preferred_element_type=jnp.float32) + b2_ref[...]
    o_ref[...] = y.astype(o_ref.dtype)


def coae_forward(x, w1, b1, w2, b2, *, tile_b=None):
    """x: (..., C); w1: (C, H); b1: (1, H); w2: (H, C); b2: (1, C)."""
    orig_shape = x.shape
    C = orig_shape[-1]
    H = w1.shape[1]

    x2 = x.reshape(-1, C)            # contiguous reshape: no extra HBM pass
    B = x2.shape[0]

    vmem_budget = _vmem_budget_bytes()
    itemsize = jnp.dtype(x.dtype).itemsize
    if tile_b is None:
        tb = _pick_batch_tile(B, C, itemsize, vmem_budget)
    else:
        tb = max(_SUBLANE,
                 _round_up(min(tile_b, _round_up(B, _SUBLANE)), _SUBLANE))
    grid = (pl.cdiv(B, tb),)

    y2 = pl.pallas_call(
        _coae_mlp_kernel,
        out_shape=jax.ShapeDtypeStruct((B, C), x.dtype),
        grid=grid,
        in_specs=[
            # Activations: batch-tiled; Pallas double-buffers the HBM<->VMEM DMAs
            # and handles the ragged last block (OOB rows never written back).
            pl.BlockSpec((tb, C), lambda i: (i, 0)),
            # Weights / biases: constant index_map -> DMA'd once, VMEM-resident.
            pl.BlockSpec((C, H), lambda i: (0, 0)),
            pl.BlockSpec((1, H), lambda i: (0, 0)),
            pl.BlockSpec((H, C), lambda i: (0, 0)),
            pl.BlockSpec((1, C), lambda i: (0, 0)),
        ],
        out_specs=pl.BlockSpec((tb, C), lambda i: (i, 0)),
        compiler_params=pltpu.CompilerParams(
            dimension_semantics=("parallel",),     # v7x: both TCs split the batch grid
            vmem_limit_bytes=int(vmem_budget),     # allow multi-MB activation tiles
        ),
    )(x2, w1, b1, w2, b2)

    return y2.reshape(orig_shape)


def _ref_forward(x, w1, b1, w2, b2):
    return jnp.maximum(x @ w1 + b1, 0.0) @ w2 + b2


def init_coae_params(key, in_channels=20, hidden=16, dtype=jnp.float32):
    """Deterministic init mimicking nn.Linear defaults: U(-1/sqrt(fan_in), +)."""
    k1, k2, k3, k4 = jax.random.split(key, 4)
    bound1 = 1.0 / jnp.sqrt(jnp.float32(in_channels))
    bound2 = 1.0 / jnp.sqrt(jnp.float32(hidden))
    w1 = jax.random.uniform(k1, (in_channels, hidden), dtype, -bound1, bound1)
    b1 = jax.random.uniform(k2, (1, hidden), dtype, -bound1, bound1)
    w2 = jax.random.uniform(k3, (hidden, in_channels), dtype, -bound2, bound2)
    b2 = jax.random.uniform(k4, (1, in_channels), dtype, -bound2, bound2)
    return w1, b1, w2, b2


if __name__ == "__main__":
    key = jax.random.PRNGKey(0)
    kx, kx2, kp = jax.random.split(key, 3)

    in_channels = 20   # module default
    hidden = 16
    w1, b1, w2, b2 = init_coae_params(kp, in_channels, hidden)

    # 1) Small shape matching the module's default usage (single grid step).
    batch = 8
    x = jax.random.normal(kx, (batch, in_channels), jnp.float32)
    y = jax.block_until_ready(jax.jit(coae_forward)(x, w1, b1, w2, b2))
    ref = _ref_forward(x, w1, b1, w2, b2)
    assert y.shape == (batch, in_channels)
    assert jnp.allclose(y, ref, atol=1e-5, rtol=1e-5)

    # 2) Multi-step grid with a ragged tail (forced small tile) to exercise the
    #    partial last block and the pipelined path.
    xb = jax.random.normal(kx2, (1337, in_channels), jnp.float32)
    yb = jax.block_until_ready(
        jax.jit(lambda a: coae_forward(a, w1, b1, w2, b2, tile_b=512))(xb))
    refb = _ref_forward(xb, w1, b1, w2, b2)
    assert yb.shape == xb.shape
    assert jnp.allclose(yb, refb, atol=1e-5, rtol=1e-5)

    print("KERNEL_OK")
</pallas_src>

<mosaic_0001>
module attributes {stable_mosaic.version = 11 : i64} {
  func.func @_coae_mlp_kernel(%arg0: i32, %arg1: memref<8x20xf32, #tpu.memory_space<vmem>>, %arg2: memref<20x16xf32, #tpu.memory_space<vmem>>, %arg3: memref<1x16xf32, #tpu.memory_space<vmem>>, %arg4: memref<16x20xf32, #tpu.memory_space<vmem>>, %arg5: memref<1x20xf32, #tpu.memory_space<vmem>>, %arg6: memref<8x20xf32, #tpu.memory_space<vmem>>) attributes {dimension_semantics = [#tpu.dimension_semantics<parallel>], iteration_bounds = array<i64: 1>, scalar_prefetch = 0 : i64, scratch_operands = 0 : i64, tpu.core_type = #tpu.core_type<tc>, window_params = [{transform_indices = @transform_0, window_bounds = array<i64: 8, 20>}, {pipeline_mode = #tpu.pipeline_mode<synchronous>, transform_indices = @transform_1, window_bounds = array<i64: 20, 16>}, {pipeline_mode = #tpu.pipeline_mode<synchronous>, transform_indices = @transform_2, window_bounds = array<i64: 1, 16>}, {pipeline_mode = #tpu.pipeline_mode<synchronous>, transform_indices = @transform_3, window_bounds = array<i64: 16, 20>}, {pipeline_mode = #tpu.pipeline_mode<synchronous>, transform_indices = @transform_4, window_bounds = array<i64: 1, 20>}, {transform_indices = @transform_5, window_bounds = array<i64: 8, 20>}]} {
    %c0 = arith.constant 0 : index
    %c0_0 = arith.constant 0 : index
    %0 = vector.load %arg1[%c0, %c0_0] : memref<8x20xf32, #tpu.memory_space<vmem>>, vector<8x20xf32>
    %c0_1 = arith.constant 0 : index
    %c0_2 = arith.constant 0 : index
    %1 = vector.load %arg2[%c0_1, %c0_2] : memref<20x16xf32, #tpu.memory_space<vmem>>, vector<20x16xf32>
    %cst = arith.constant dense<0.000000e+00> : vector<8x16xf32>
    %2 = tpu.matmul %0, %1, %cst {dimension_numbers = #tpu.dot_dimension_numbers<[1], [0], [0], [1], [0, 0, 1, 1], [], []>} : vector<8x20xf32>, vector<20x16xf32>, vector<8x16xf32> -> vector<8x16xf32>
    %c0_3 = arith.constant 0 : index
    %c0_4 = arith.constant 0 : index
    %3 = vector.load %arg3[%c0_3, %c0_4] : memref<1x16xf32, #tpu.memory_space<vmem>>, vector<1x16xf32>
    %4 = vector.broadcast %3 : vector<1x16xf32> to vector<8x16xf32>
    %5 = arith.addf %2, %4 : vector<8x16xf32>
    %cst_5 = arith.constant 0.000000e+00 : f32
    %6 = vector.broadcast %cst_5 : f32 to vector<8x16xf32>
    %7 = arith.maximumf %5, %6 : vector<8x16xf32>
    %c0_6 = arith.constant 0 : index
    %c0_7 = arith.constant 0 : index
    %8 = vector.load %arg4[%c0_6, %c0_7] : memref<16x20xf32, #tpu.memory_space<vmem>>, vector<16x20xf32>
    %cst_8 = arith.constant dense<0.000000e+00> : vector<8x20xf32>
    %9 = tpu.matmul %7, %8, %cst_8 {dimension_numbers = #tpu.dot_dimension_numbers<[1], [0], [0], [1], [0, 0, 1, 1], [], []>} : vector<8x16xf32>, vector<16x20xf32>, vector<8x20xf32> -> vector<8x20xf32>
    %c0_9 = arith.constant 0 : index
    %c0_10 = arith.constant 0 : index
    %10 = vector.load %arg5[%c0_9, %c0_10] : memref<1x20xf32, #tpu.memory_space<vmem>>, vector<1x20xf32>
    %11 = vector.broadcast %10 : vector<1x20xf32> to vector<8x20xf32>
    %12 = arith.addf %9, %11 : vector<8x20xf32>
    %c0_11 = arith.constant 0 : index
    %c0_12 = arith.constant 0 : index
    %13 = vector.load %arg6[%c0_11, %c0_12] : memref<8x20xf32, #tpu.memory_space<vmem>>, vector<8x20xf32>
    tpu.vector_store %arg6[%c0_11, %c0_12], %12 {strides = array<i32>} : memref<8x20xf32, #tpu.memory_space<vmem>>, vector<8x20xf32>,
    return
  }
  func.func @transform_0(%arg0: i32) -> (i32, i32) {
    %c0_i32 = arith.constant 0 : i32
    %c0_i32_0 = arith.constant 0 : i32
    return %arg0, %c0_i32 : i32, i32
  }
  func.func @transform_1(%arg0: i32) -> (i32, i32) {
    %c0_i32 = arith.constant 0 : i32
    %c0_i32_0 = arith.constant 0 : i32
    %c0_i32_1 = arith.constant 0 : i32
    return %c0_i32, %c0_i32_0 : i32, i32
  }
  func.func @transform_2(%arg0: i32) -> (i32, i32) {
    %c0_i32 = arith.constant 0 : i32
    %c0_i32_0 = arith.constant 0 : i32
    %c0_i32_1 = arith.constant 0 : i32
    return %c0_i32, %c0_i32_0 : i32, i32
  }
  func.func @transform_3(%arg0: i32) -> (i32, i32) {
    %c0_i32 = arith.constant 0 : i32
    %c0_i32_0 = arith.constant 0 : i32
    %c0_i32_1 = arith.constant 0 : i32
    return %c0_i32, %c0_i32_0 : i32, i32
  }
  func.func @transform_4(%arg0: i32) -> (i32, i32) {
    %c0_i32 = arith.constant 0 : i32
    %c0_i32_0 = arith.constant 0 : i32
    %c0_i32_1 = arith.constant 0 : i32
    return %c0_i32, %c0_i32_0 : i32, i32
  }
  func.func @transform_5(%arg0: i32) -> (i32, i32) {
    %c0_i32 = arith.constant 0 : i32
    %c0_i32_0 = arith.constant 0 : i32
    return %arg0, %c0_i32 : i32, i32
  }
}

</mosaic_0001>

<llo_original>
// kernel: coae_forward.1
$region0: #{coae_forward.1}
  #allocation0 [shape = 'u32[]', space=smem, size = 0x4, offset = 0x4, fixed_abs, tag = 'smem constant byte address 0x4 - core index']
  #allocation1 [shape = 'u32[144,128]{1,0:T(1,128)}', space=vmem, size = 0x12000, scoped, tag = 'internal scratch']
  %s0 = inlined_call_operand.vmem [shape: f32[8,20], index: 0, kind: input, shape index: {}]
  %s1 = inlined_call_operand.vmem [shape: f32[20,16], index: 1, kind: input, shape index: {}]
  %s2 = inlined_call_operand.vmem [shape: f32[1,16], index: 2, kind: input, shape index: {}]
  %s3 = inlined_call_operand.vmem [shape: f32[16,20], index: 3, kind: input, shape index: {}]
  %s4 = inlined_call_operand.vmem [shape: f32[1,20], index: 4, kind: input, shape index: {}]
  %s5 = inlined_call_operand.hbm [shape: f32[8,20], index: 5, kind: output, shape index: {}]
  %s6 = sld [smem:[#allocation0]]
  $region30: #{coae_forward.1} parent=0
    _
  %s8 = ssub.s32 1, %s6
  %s9 = scalar_select 0, %s8, %s6
  $region1: #{coae_forward.1} parent=0
    #allocation2 [shape = 'u8[4096]{0}', space=vmem, size = 0x1000, scoped, tag = 'output window, operand 0, single buffered']
    #allocation3 [shape = 's32[1]{0}', space=sflag, size = 0x4, scoped, tag = 'scoped memory for coae_forward.1']
    %10 = vsyncpa [#allocation3], 0
    // Predicated region
    $region2: #{coae_forward.1} parent=1 // pred_check
      _
    $region3: #{coae_forward.1} parent=1 // pred_check_branch
      %12 = sbr.rel (0) target = $region5
    $region4: #{coae_forward.1} parent=1 // pred_region
      _
    $region5: #{coae_forward.1} parent=1 // pred_fallthru
      _
    // Predicated region
    $region6: #{coae_forward.1} parent=1 // pred_check
      _
    $region7: #{coae_forward.1} parent=1 // pred_check_branch
      %14 = sbr.rel (0) target = $region9
    $region8: #{coae_forward.1} parent=1 // pred_region
      _
    $region9: #{coae_forward.1} parent=1 // pred_fallthru
      _
    // Predicated region
    $region10: #{coae_forward.1} parent=1 // pred_check
      _
    $region11: #{coae_forward.1} parent=1 // pred_check_branch
      %16 = sbr.rel (0) target = $region13
    $region12: #{coae_forward.1} parent=1 // pred_region
      _
    $region13: #{coae_forward.1} parent=1 // pred_fallthru
      _
    // Predicated region
    $region14: #{coae_forward.1} parent=1 // pred_check
      _
    $region15: #{coae_forward.1} parent=1 // pred_check_branch
      %18 = sbr.rel (0) target = $region17
    $region16: #{coae_forward.1} parent=1 // pred_region
      _
    $region17: #{coae_forward.1} parent=1 // pred_fallthru
      _
    // Predicated region
    $region18: #{coae_forward.1} parent=1 // pred_check
      _
    $region19: #{coae_forward.1} parent=1 // pred_check_branch
      %20 = sbr.rel (0) target = $region21
    $region20: #{coae_forward.1} parent=1 // pred_region
      _
    $region21: #{coae_forward.1} parent=1 // pred_fallthru
      _
    %v21 = vld [vmem:[%s0] sm:$0xff]
    %v22 = vld [vmem:[%s1] sm:$0xff]
    %v23 = vld [vmem:[%s1 + $0x8] sm:$0xff]
    %v24 = vld [vmem:[%s1 + $0x10] sm:$0xf]
    %v25 = vld [vmem:[%s2] sm:$0x1]
    %v27 = vlaneseq
    %v28 = vshrl.u32 %v27, 7
    %v29 = vsub.s32 0, %v28
    %v30 = vrot.slane %v25, %v29
    %vm32 = vcmask 162816
    %v34 = vsel %vm32, %v21, 0
    %vm36 = vcmask 1043456
    %v38 = vsel %vm36, %v24, 0
    %40 = vmatprep.subr.mxu0 0.0
    %41 = vmatpush1.msra.mxu0 %v22
    %42 = vmatprep.subr.mxu0 0.0
    %43 = vmatpush1.msra.mxu0 %v23
    %44 = vmatprep.subr.mxu0 0.0
    %45 = vmatpush1.msra.mxu0 %v38
    %46 = vmatprep.subr.mxu0 0.0
    %47 = vmatpush1.msra.mxu0 0.0
    %48 = vmatprep.subr.mxu0 0.0
    %49 = vmatpush1.msra.mxu0 0.0
    %50 = vmatprep.subr.mxu0 0.0
    %51 = vmatpush1.msra.mxu0 0.0
    %52 = vmatprep.subr.mxu0 0.0
    %53 = vmatpush1.msra.mxu0 0.0
    %54 = vmatprep.subr.mxu0 0.0
    %55 = vmatpush1.msra.mxu0 0.0
    %56 = vmatprep.subr.mxu0 0.0
    %57 = vmatpush1.msra.mxu0 0.0
    %58 = vmatprep.subr.mxu0 0.0
    %59 = vmatpush1.msra.mxu0 0.0
    %60 = vmatprep.subr.mxu0 0.0
    %61 = vmatpush1.msra.mxu0 0.0
    %62 = vmatprep.subr.mxu0 0.0
    %63 = vmatpush1.msra.mxu0 0.0
    %64 = vmatprep.subr.mxu0 0.0
    %65 = vmatpush1.msra.mxu0 0.0
    %66 = vmatprep.subr.mxu0 0.0
    %67 = vmatpush1.msra.mxu0 0.0
    %68 = vmatprep.subr.mxu0 0.0
    %69 = vmatpush1.msra.mxu0 0.0
    %70 = vmatprep.subr.mxu0 0.0
    %71 = vmatpush1.msra.mxu0 0.0
    %72 = vmatprep.subr.mxu0 0.0
    %73 = vmatpush1.msra.mxu0 0.0
    %74 = vmatprep.subr.mxu0 0.0
    %75 = vmatpush1.msra.mxu0 0.0
    %76 = vmatprep.subr.mxu0 0.0
    %77 = vmatpush1.msra.mxu0 0.0
    %78 = vmatprep.subr.mxu0 0.0
    %79 = vmatpush1.msra.mxu0 0.0
    %80 = vmatprep.subr.mxu0 0.0
    %81 = vmatpush1.msra.mxu0 0.0
    %82 = vmatprep.subr.mxu0 0.0
    %83 = vmatpush1.msra.mxu0 0.0
    %84 = vmatprep.subr.mxu0 0.0
    %85 = vmatpush1.msra.mxu0 0.0
    %86 = vmatprep.subr.mxu0 0.0
    %87 = vmatpush1.msra.mxu0 0.0
    %88 = vmatprep.subr.mxu0 0.0
    %89 = vmatpush1.msra.mxu0 0.0
    %90 = vmatprep.subr.mxu0 0.0
    %91 = vmatpush1.msra.mxu0 0.0
    %92 = vmatprep.subr.mxu0 0.0
    %93 = vmatpush1.msra.mxu0 0.0
    %94 = vmatprep.subr.mxu0 0.0
    %95 = vmatpush1.msra.mxu0 0.0
    %96 = vmatprep.subr.mxu0 0.0
    %97 = vmatpush1.msra.mxu0 0.0
    %98 = vmatprep.subr.mxu0 0.0
    %99 = vmatpush1.msra.mxu0 0.0
    %100 = vmatprep.subr.mxu0 0.0
    %101 = vmatpush1.msra.mxu0 0.0
    %102 = vmatprep.subr.mxu0 0.0
    %103 = vmatpush1.msra.mxu0 0.0
    %104 = vmatprep.mubr.f32.mxu0 0.0
    %105 = vmatmul.mubr.f32.gmra.mrb[0].mxu0 %v34
    %v106 = vpop.f32.mrb[0].mxu0
    %v107 = vadd.f32 %v30, %v106
    %v108 = vpop.f32.mrb[0].mxu0
    %109 = vdwg.mxu0
    %v110 = vmax.f32 %v107, 0.0
    %v111 = vld [vmem:[%s3] sm:$0xff]
    %v112 = vld [vmem:[%s3 + $0x8] sm:$0xff]
    %v113 = vld [vmem:[%s4] sm:$0x1]
    %v115 = vlaneseq
    %v116 = vshrl.u32 %v115, 7
    %v117 = vsub.s32 0, %v116
    %v118 = vrot.slane %v113, %v117
    %vm120 = vcmask 130048
    %v122 = vsel %vm120, %v110, 0
    %124 = vmatprep.subr.mxu0 0.0
    %125 = vmatpush1.msra.mxu0 %v111
    %126 = vmatprep.subr.mxu0 0.0
    %127 = vmatpush1.msra.mxu0 %v112
    %128 = vmatprep.subr.mxu0 0.0
    %129 = vmatpush1.msra.mxu0 0.0
    %130 = vmatprep.subr.mxu0 0.0
    %131 = vmatpush1.msra.mxu0 0.0
    %132 = vmatprep.subr.mxu0 0.0
    %133 = vmatpush1.msra.mxu0 0.0
    %134 = vmatprep.subr.mxu0 0.0
    %135 = vmatpush1.msra.mxu0 0.0
    %136 = vmatprep.subr.mxu0 0.0
    %137 = vmatpush1.msra.mxu0 0.0
    %138 = vmatprep.subr.mxu0 0.0
    %139 = vmatpush1.msra.mxu0 0.0
    %140 = vmatprep.subr.mxu0 0.0
    %141 = vmatpush1.msra.mxu0 0.0
    %142 = vmatprep.subr.mxu0 0.0
    %143 = vmatpush1.msra.mxu0 0.0
    %144 = vmatprep.subr.mxu0 0.0
    %145 = vmatpush1.msra.mxu0 0.0
    %146 = vmatprep.subr.mxu0 0.0
    %147 = vmatpush1.msra.mxu0 0.0
    %148 = vmatprep.subr.mxu0 0.0
    %149 = vmatpush1.msra.mxu0 0.0
    %150 = vmatprep.subr.mxu0 0.0
    %151 = vmatpush1.msra.mxu0 0.0
    %152 = vmatprep.subr.mxu0 0.0
    %153 = vmatpush1.msra.mxu0 0.0
    %154 = vmatprep.subr.mxu0 0.0
    %155 = vmatpush1.msra.mxu0 0.0
    %156 = vmatprep.subr.mxu0 0.0
    %157 = vmatpush1.msra.mxu0 0.0
    %158 = vmatprep.subr.mxu0 0.0
    %159 = vmatpush1.msra.mxu0 0.0
    %160 = vmatprep.subr.mxu0 0.0
    %161 = vmatpush1.msra.mxu0 0.0
    %162 = vmatprep.subr.mxu0 0.0
    %163 = vmatpush1.msra.mxu0 0.0
    %164 = vmatprep.subr.mxu0 0.0
    %165 = vmatpush1.msra.mxu0 0.0
    %166 = vmatprep.subr.mxu0 0.0
    %167 = vmatpush1.msra.mxu0 0.0
    %168 = vmatprep.subr.mxu0 0.0
    %169 = vmatpush1.msra.mxu0 0.0
    %170 = vmatprep.subr.mxu0 0.0
    %171 = vmatpush1.msra.mxu0 0.0
    %172 = vmatprep.subr.mxu0 0.0
    %173 = vmatpush1.msra.mxu0 0.0
    %174 = vmatprep.subr.mxu0 0.0
    %175 = vmatpush1.msra.mxu0 0.0
    %176 = vmatprep.subr.mxu0 0.0
    %177 = vmatpush1.msra.mxu0 0.0
    %178 = vmatprep.subr.mxu0 0.0
    %179 = vmatpush1.msra.mxu0 0.0
    %180 = vmatprep.subr.mxu0 0.0
    %181 = vmatpush1.msra.mxu0 0.0
    %182 = vmatprep.subr.mxu0 0.0
    %183 = vmatpush1.msra.mxu0 0.0
    %184 = vmatprep.subr.mxu0 0.0
    %185 = vmatpush1.msra.mxu0 0.0
    %186 = vmatprep.subr.mxu0 0.0
    %187 = vmatpush1.msra.mxu0 0.0
    %188 = vmatprep.mubr.f32.mxu0 0.0
    %189 = vmatmul.mubr.f32.gmra.mrb[0].mxu0 %v122
    %v190 = vpop.f32.mrb[0].mxu0
    %v191 = vadd.f32 %v118, %v190
    %v192 = vpop.f32.mrb[0].mxu0
    %193 = vdwg.mxu0
    %194 = vst.msk [vmem:[#allocation2] sm:$0xff] %vm32, %v191
    // Predicated region
    $region22: #{coae_forward.1} parent=1 // pred_check
      _
    $region23: #{coae_forward.1} parent=1 // pred_check_branch
      %196 = sbr.rel (0) target = $region25
    $region24: #{coae_forward.1} parent=1 // pred_region
      %s198 = ssub.s32 128, 128
      %199 = vsyncadd [#allocation3], %s198
      %s201 = sshll.u32 [#allocation2], 4
      %s202 = int_to_ptr.vmem [resolvable:$true] %s201
      %204 = dma.vmem_to_hbm [thread:$0]  %s202, 128, %s5, [#allocation3]
    $region25: #{coae_forward.1} parent=1 // pred_fallthru
      _
    // Predicated region
    $region26: #{coae_forward.1} parent=1 // pred_check
      _
    $region27: #{coae_forward.1} parent=1 // pred_check_branch
      %206 = sbr.rel (0) target = $region29
    $region28: #{coae_forward.1} parent=1 // pred_region
      %207 = dma.done [#allocation3], 128
    $region29: #{coae_forward.1} parent=1 // pred_fallthru
      _
    %208 = vsyncpa [#allocation3], 1

</llo_original>
